<compile_context>
chip_gen: v5e
topology: v5e:2x2
jax: 0.10.0
libtpu: 0.0.40
codegen_flags: <defaults>
</compile_context>

<pallas_src>
import functools

import jax
import jax.numpy as jnp
from jax import lax
from jax.experimental import pallas as pl
from jax.experimental.pallas import tpu as pltpu


# ----------------------------------------------------------------------------
# Pallas kernel
# ----------------------------------------------------------------------------
def _spa_loss_kernel(a_ref, p_ref, n_ref, dap_ref, dan_ref, o_ref, acc_ref,
                     *, s_total: int, ts: int, bt: int):
    """One grid step = bt batch rows x ts samples (R = bt*ts rows of D dims).

    a/p/n_ref : (1, R, D) embedding tiles
    dap/dan   : (1, 1, R) lane-dense ground-truth distances
    o_ref     : (1, 1, bt) per-batch-row mean loss (written on last s tile)
    acc_ref   : (1, R) f32 lane-dense loss accumulator (persists over s tiles)
    """
    R = bt * ts
    s_idx = pl.program_id(1)
    n_s = pl.num_programs(1)

    @pl.when(s_idx == 0)
    def _():
        acc_ref[...] = jnp.zeros_like(acc_ref)

    # (R, D) tiles; cast to f32 in-kernel so bf16 inputs stay bf16 in HBM.
    a = a_ref[0].astype(jnp.float32)
    p = p_ref[0].astype(jnp.float32)
    n = n_ref[0].astype(jnp.float32)

    diff_ap = a - p
    diff_an = a - n
    sq_ap = diff_ap * diff_ap
    sq_an = diff_an * diff_an

    # MXU reduction over the embedding (contracting) axis.
    # ones(8, D) @ sq(R, D)^T -> (8, R); all 8 rows identical, keep row 0.
    # Result is lane-dense: the R tile rows live on the lane axis.
    d = a.shape[-1]
    ones = jnp.ones((8, d), jnp.float32)
    dims = (((1,), (1,)), ((), ()))   # contract D of both operands (rhs transposed)
    ssq_ap = lax.dot_general(ones, sq_ap, dims,
                             preferred_element_type=jnp.float32)[0:1, :]
    ssq_an = lax.dot_general(ones, sq_an, dims,
                             preferred_element_type=jnp.float32)[0:1, :]

    # Lane-dense tail: every temp is (1, R).
    v_ap = jnp.exp(-jnp.sqrt(ssq_ap))
    v_an = jnp.exp(-jnp.sqrt(ssq_an))

    d_ap = dap_ref[0].astype(jnp.float32)   # (1, R)
    d_an = dan_ref[0].astype(jnp.float32)

    e_ap = d_ap - v_ap
    e_an = d_an - v_an
    hinge = jnp.maximum(v_an - v_ap, 0.0)
    loss = e_ap * e_ap + e_an * e_an + jnp.where(d_ap > d_an, hinge * hinge, 0.0)

    acc_ref[...] += loss

    @pl.when(s_idx == n_s - 1)
    def _():
        # Segmented sum over lanes: lane r belongs to local batch row r // ts.
        # Done as a tiny matmul so no lane<->sublane relayout is needed.
        row = lax.broadcasted_iota(jnp.int32, (R, bt), 0)
        col = lax.broadcasted_iota(jnp.int32, (R, bt), 1)
        seg = ((row >= col * ts) & (row < (col + 1) * ts)).astype(jnp.float32)
        sums = lax.dot_general(acc_ref[...], seg, (((1,), (0,)), ((), ())),
                               preferred_element_type=jnp.float32)   # (1, bt)
        o_ref[0] = sums * (1.0 / s_total)


# ----------------------------------------------------------------------------
# Tile picker
# ----------------------------------------------------------------------------
def _pick_tiling(B, S, bytes_per_row, *, vmem_per_stream=2 * 1024 * 1024):
    """Pick (bt, ts): bt batch rows folded per tile (only when ts == S) and
    ts samples per tile.  Keeps 3 streams x 2 buffers x tile under ~12 MiB
    (safe for the v5e 16 MiB scoped-VMEM default and v7x's tighter budget)."""
    max_rows = max(8, vmem_per_stream // max(1, bytes_per_row))
    if S <= max_rows:
        # Whole-S tiles; fold as many batch rows as fit (and divide B).
        ts = S
        bt = 1
        for cand in range(min(B, max(1, max_rows // S)), 0, -1):
            if B % cand == 0:
                bt = cand
                break
    else:
        # Large S: one batch row per tile, largest divisor of S that fits,
        # preferring sublane-aligned (multiple of 8) divisors.
        bt = 1
        best_any, best_aligned = 1, None
        for cand in range(1, min(S, max_rows) + 1):
            if S % cand == 0:
                best_any = cand
                if cand % 8 == 0:
                    best_aligned = cand
        ts = best_aligned if best_aligned is not None else best_any
    return bt, ts


# ----------------------------------------------------------------------------
# Wrapper
# ----------------------------------------------------------------------------
def spa_loss_fun(embedding_a, embedding_p, embedding_n, pos_dis, neg_dis,
                 *, bt: int | None = None, ts: int | None = None):
    """SpaLossFun.forward. embeddings: (B, S, D); pos/neg_dis: (B, S[, 1]).

    Returns loss.mean(dim=-1) of shape (B,), float32.  Embeddings may be
    float32 or bfloat16 (math is done in f32 inside the kernel).
    """
    B, S, D = embedding_a.shape
    itemsize = jnp.dtype(embedding_a.dtype).itemsize
    if bt is None or ts is None:
        bt, ts = _pick_tiling(B, S, itemsize * D)
    assert B % bt == 0 and S % ts == 0
    assert bt == 1 or ts == S, "batch folding requires whole-S tiles"

    R = bt * ts                       # rows per tile
    n_b = B // bt
    n_s = S // ts
    n_row_tiles = n_b * n_s           # == (B * S) // R

    # Contiguous reshapes only (no transposes / upcasts): last two block dims
    # equal the full array dims, so no (8,128) divisibility constraints apply.
    emb_a = embedding_a.reshape(n_row_tiles, R, D)
    emb_p = embedding_p.reshape(n_row_tiles, R, D)
    emb_n = embedding_n.reshape(n_row_tiles, R, D)
    d_ap = pos_dis.reshape(n_row_tiles, 1, R)     # lane-dense distances
    d_an = neg_dis.reshape(n_row_tiles, 1, R)

    kernel = functools.partial(_spa_loss_kernel, s_total=S, ts=ts, bt=bt)

    emb_spec = pl.BlockSpec((1, R, D), lambda b, s: (b * n_s + s, 0, 0))
    dis_spec = pl.BlockSpec((1, 1, R), lambda b, s: (b * n_s + s, 0, 0))

    out = pl.pallas_call(
        kernel,
        out_shape=jax.ShapeDtypeStruct((n_b, 1, bt), jnp.float32),
        grid=(n_b, n_s),
        in_specs=[emb_spec, emb_spec, emb_spec, dis_spec, dis_spec],
        # Same output block across the s axis -> resident output, written only
        # on the last s tile.
        out_specs=pl.BlockSpec((1, 1, bt), lambda b, s: (b, 0, 0)),
        scratch_shapes=[pltpu.VMEM((1, R), jnp.float32)],
        compiler_params=pltpu.CompilerParams(
            dimension_semantics=("parallel", "arbitrary"),
        ),
    )(emb_a, emb_p, emb_n, d_ap, d_an)

    return out.reshape(B)


# ----------------------------------------------------------------------------
# Pure-JAX reference for correctness check.
# ----------------------------------------------------------------------------
def _ref_loss(a, p, n, pos_dis, neg_dis):
    B = a.shape[0]
    d_ap = pos_dis.reshape(B, -1).astype(jnp.float32)
    d_an = neg_dis.reshape(B, -1).astype(jnp.float32)
    a = a.astype(jnp.float32)
    p = p.astype(jnp.float32)
    n = n.astype(jnp.float32)
    v_ap = jnp.exp(-jnp.sqrt(jnp.sum((a - p) ** 2, axis=-1)))
    v_an = jnp.exp(-jnp.sqrt(jnp.sum((a - n) ** 2, axis=-1)))
    loss = (d_ap - v_ap) ** 2 + (d_an - v_an) ** 2 \
        + jnp.where(d_ap > d_an, jnp.maximum(v_an - v_ap, 0.0) ** 2, 0.0)
    return loss.mean(axis=-1)


if __name__ == "__main__":
    B, S, D = 2, 8, 128   # batch, sampling_num, embedding dim (lane-dense)

    key = jax.random.PRNGKey(0)
    ka, kp, kn, kdp, kdn = jax.random.split(key, 5)
    # Scale embeddings so exp(-||.||) is in a meaningful range and the hinge
    # branch is exercised.
    emb_a = 0.05 * jax.random.normal(ka, (B, S, D), dtype=jnp.float32)
    emb_p = 0.05 * jax.random.normal(kp, (B, S, D), dtype=jnp.float32)
    emb_n = 0.05 * jax.random.normal(kn, (B, S, D), dtype=jnp.float32)
    pos_dis = jax.random.uniform(kdp, (B, S, 1), dtype=jnp.float32)
    neg_dis = jax.random.uniform(kdn, (B, S, 1), dtype=jnp.float32)

    # f32 inputs
    out = jax.block_until_ready(spa_loss_fun(emb_a, emb_p, emb_n, pos_dis, neg_dis))
    ref = _ref_loss(emb_a, emb_p, emb_n, pos_dis, neg_dis)
    assert out.shape == (B,), out.shape
    assert jnp.allclose(out, ref, atol=1e-5, rtol=1e-4), (out, ref)

    # bf16 embeddings end-to-end (HBM bytes halved; in-kernel math stays f32).
    emb_a16 = emb_a.astype(jnp.bfloat16)
    emb_p16 = emb_p.astype(jnp.bfloat16)
    emb_n16 = emb_n.astype(jnp.bfloat16)
    out16 = jax.block_until_ready(
        spa_loss_fun(emb_a16, emb_p16, emb_n16, pos_dis, neg_dis))
    ref16 = _ref_loss(emb_a16, emb_p16, emb_n16, pos_dis, neg_dis)
    assert jnp.allclose(out16, ref16, atol=1e-5, rtol=1e-4), (out16, ref16)

    print("KERNEL_OK")
</pallas_src>

<mosaic_0001>
module attributes {stable_mosaic.version = 11 : i64} {
  func.func @_spa_loss_kernel(%arg0: i32, %arg1: i32, %arg2: memref<1x16x128xf32, #tpu.memory_space<vmem>>, %arg3: memref<1x16x128xf32, #tpu.memory_space<vmem>>, %arg4: memref<1x16x128xf32, #tpu.memory_space<vmem>>, %arg5: memref<1x1x16xf32, #tpu.memory_space<vmem>>, %arg6: memref<1x1x16xf32, #tpu.memory_space<vmem>>, %arg7: memref<1x1x2xf32, #tpu.memory_space<vmem>>, %arg8: memref<1x16xf32, #tpu.memory_space<vmem>>) attributes {dimension_semantics = [#tpu.dimension_semantics<parallel>, #tpu.dimension_semantics<arbitrary>], iteration_bounds = array<i64: 1, 1>, scalar_prefetch = 0 : i64, scratch_operands = 1 : i64, tpu.core_type = #tpu.core_type<tc>, window_params = [{transform_indices = @transform_0, window_bounds = array<i64: 1, 16, 128>}, {transform_indices = @transform_1, window_bounds = array<i64: 1, 16, 128>}, {transform_indices = @transform_2, window_bounds = array<i64: 1, 16, 128>}, {transform_indices = @transform_3, window_bounds = array<i64: 1, 1, 16>}, {transform_indices = @transform_4, window_bounds = array<i64: 1, 1, 16>}, {transform_indices = @transform_5, window_bounds = array<i64: 1, 1, 2>}]} {
    %c0_i32 = arith.constant 0 : i32
    %0 = arith.cmpi eq, %arg1, %c0_i32 : i32
    %1 = arith.extui %0 : i1 to i32
    %c0_i32_0 = arith.constant 0 : i32
    %2 = arith.cmpi ne, %1, %c0_i32_0 : i32
    scf.if %2 {
      %cst_27 = arith.constant 0.000000e+00 : f32
      %49 = vector.broadcast %cst_27 : f32 to vector<1x16xf32>
      %c0_28 = arith.constant 0 : index
      %c0_29 = arith.constant 0 : index
      %50 = vector.load %arg8[%c0_28, %c0_29] : memref<1x16xf32, #tpu.memory_space<vmem>>, vector<1x16xf32>
      tpu.vector_store %arg8[%c0_28, %c0_29], %49 {strides = array<i32>} : memref<1x16xf32, #tpu.memory_space<vmem>>, vector<1x16xf32>,
    } else {
    }
    %c0 = arith.constant 0 : index
    %c0_1 = arith.constant 0 : index
    %c0_2 = arith.constant 0 : index
    %3 = vector.load %arg2[%c0, %c0_1, %c0_2] : memref<1x16x128xf32, #tpu.memory_space<vmem>>, vector<1x16x128xf32>
    %4 = vector.shape_cast %3 : vector<1x16x128xf32> to vector<16x128xf32>
    %c0_3 = arith.constant 0 : index
    %c0_4 = arith.constant 0 : index
    %c0_5 = arith.constant 0 : index
    %5 = vector.load %arg3[%c0_3, %c0_4, %c0_5] : memref<1x16x128xf32, #tpu.memory_space<vmem>>, vector<1x16x128xf32>
    %6 = vector.shape_cast %5 : vector<1x16x128xf32> to vector<16x128xf32>
    %c0_6 = arith.constant 0 : index
    %c0_7 = arith.constant 0 : index
    %c0_8 = arith.constant 0 : index
    %7 = vector.load %arg4[%c0_6, %c0_7, %c0_8] : memref<1x16x128xf32, #tpu.memory_space<vmem>>, vector<1x16x128xf32>
    %8 = vector.shape_cast %7 : vector<1x16x128xf32> to vector<16x128xf32>
    %9 = arith.subf %4, %6 : vector<16x128xf32>
    %10 = arith.subf %4, %8 : vector<16x128xf32>
    %11 = arith.mulf %9, %9 : vector<16x128xf32>
    %12 = arith.mulf %10, %10 : vector<16x128xf32>
    %cst = arith.constant 1.000000e+00 : f32
    %13 = vector.broadcast %cst : f32 to vector<8x128xf32>
    %cst_9 = arith.constant dense<0.000000e+00> : vector<8x16xf32>
    %14 = tpu.matmul %13, %11, %cst_9 {dimension_numbers = #tpu.dot_dimension_numbers<[1], [1], [0], [0], [0, 0, 1, 0], [], []>} : vector<8x128xf32>, vector<16x128xf32>, vector<8x16xf32> -> vector<8x16xf32>
    %15 = vector.extract_strided_slice %14 {offsets = [0, 0], sizes = [1, 16], strides = [1, 1]} : vector<8x16xf32> to vector<1x16xf32>
    %cst_10 = arith.constant dense<0.000000e+00> : vector<8x16xf32>
    %16 = tpu.matmul %13, %12, %cst_10 {dimension_numbers = #tpu.dot_dimension_numbers<[1], [1], [0], [0], [0, 0, 1, 0], [], []>} : vector<8x128xf32>, vector<16x128xf32>, vector<8x16xf32> -> vector<8x16xf32>
    %17 = vector.extract_strided_slice %16 {offsets = [0, 0], sizes = [1, 16], strides = [1, 1]} : vector<8x16xf32> to vector<1x16xf32>
    %18 = math.sqrt %15 : vector<1x16xf32>
    %cst_11 = arith.constant 0.000000e+00 : f32
    %19 = vector.broadcast %cst_11 : f32 to vector<1x16xf32>
    %20 = arith.subf %19, %18 : vector<1x16xf32>
    %21 = math.exp %20 : vector<1x16xf32>
    %22 = math.sqrt %17 : vector<1x16xf32>
    %cst_12 = arith.constant 0.000000e+00 : f32
    %23 = vector.broadcast %cst_12 : f32 to vector<1x16xf32>
    %24 = arith.subf %23, %22 : vector<1x16xf32>
    %25 = math.exp %24 : vector<1x16xf32>
    %c0_13 = arith.constant 0 : index
    %c0_14 = arith.constant 0 : index
    %c0_15 = arith.constant 0 : index
    %26 = vector.load %arg5[%c0_13, %c0_14, %c0_15] : memref<1x1x16xf32, #tpu.memory_space<vmem>>, vector<1x1x16xf32>
    %27 = vector.shape_cast %26 : vector<1x1x16xf32> to vector<1x16xf32>
    %c0_16 = arith.constant 0 : index
    %c0_17 = arith.constant 0 : index
    %c0_18 = arith.constant 0 : index
    %28 = vector.load %arg6[%c0_16, %c0_17, %c0_18] : memref<1x1x16xf32, #tpu.memory_space<vmem>>, vector<1x1x16xf32>
    %29 = vector.shape_cast %28 : vector<1x1x16xf32> to vector<1x16xf32>
    %30 = arith.subf %27, %21 : vector<1x16xf32>
    %31 = arith.subf %29, %25 : vector<1x16xf32>
    %32 = arith.subf %25, %21 : vector<1x16xf32>
    %cst_19 = arith.constant 0.000000e+00 : f32
    %33 = vector.broadcast %cst_19 : f32 to vector<1x16xf32>
    %34 = arith.maximumf %32, %33 : vector<1x16xf32>
    %35 = arith.mulf %30, %30 : vector<1x16xf32>
    %36 = arith.mulf %31, %31 : vector<1x16xf32>
    %37 = arith.addf %35, %36 : vector<1x16xf32>
    %38 = arith.cmpf ogt, %27, %29 : vector<1x16xf32>
    %39 = arith.mulf %34, %34 : vector<1x16xf32>
    %cst_20 = arith.constant 0.000000e+00 : f32
    %40 = vector.broadcast %cst_20 : f32 to vector<1x16xf32>
    %41 = arith.select %38, %39, %40 : vector<1x16xi1>, vector<1x16xf32>
    %42 = arith.addf %37, %41 : vector<1x16xf32>
    %c0_21 = arith.constant 0 : index
    %c0_22 = arith.constant 0 : index
    %43 = vector.load %arg8[%c0_21, %c0_22] : memref<1x16xf32, #tpu.memory_space<vmem>>, vector<1x16xf32>
    %44 = arith.addf %43, %42 : vector<1x16xf32>
    %c0_23 = arith.constant 0 : index
    %c0_24 = arith.constant 0 : index
    %45 = vector.load %arg8[%c0_23, %c0_24] : memref<1x16xf32, #tpu.memory_space<vmem>>, vector<1x16xf32>
    tpu.vector_store %arg8[%c0_23, %c0_24], %44 {strides = array<i32>} : memref<1x16xf32, #tpu.memory_space<vmem>>, vector<1x16xf32>,
    %c0_i32_25 = arith.constant 0 : i32
    %46 = arith.cmpi eq, %arg1, %c0_i32_25 : i32
    %47 = arith.extui %46 : i1 to i32
    %c0_i32_26 = arith.constant 0 : i32
    %48 = arith.cmpi ne, %47, %c0_i32_26 : i32
    scf.if %48 {
      %49 = tpu.iota {dimensions = array<i32: 0>} : vector<16x2xi32>
      %50 = tpu.iota {dimensions = array<i32: 1>} : vector<16x2xi32>
      %c8_i32 = arith.constant 8 : i32
      %51 = vector.broadcast %c8_i32 : i32 to vector<16x2xi32>
      %52 = arith.muli %50, %51 : vector<16x2xi32>
      %53 = arith.cmpi sge, %49, %52 : vector<16x2xi32>
      %c1_i32 = arith.constant 1 : i32
      %54 = vector.broadcast %c1_i32 : i32 to vector<16x2xi32>
      %55 = arith.addi %50, %54 : vector<16x2xi32>
      %c8_i32_27 = arith.constant 8 : i32
      %56 = vector.broadcast %c8_i32_27 : i32 to vector<16x2xi32>
      %57 = arith.muli %55, %56 : vector<16x2xi32>
      %58 = arith.cmpi slt, %49, %57 : vector<16x2xi32>
      %59 = arith.andi %53, %58 : vector<16x2xi1>
      %60 = arith.extui %59 : vector<16x2xi1> to vector<16x2xi32>
      %61 = arith.sitofp %60 : vector<16x2xi32> to vector<16x2xf32>
      %c0_28 = arith.constant 0 : index
      %c0_29 = arith.constant 0 : index
      %62 = vector.load %arg8[%c0_28, %c0_29] : memref<1x16xf32, #tpu.memory_space<vmem>>, vector<1x16xf32>
      %cst_30 = arith.constant dense<0.000000e+00> : vector<1x2xf32>
      %63 = tpu.matmul %62, %61, %cst_30 {dimension_numbers = #tpu.dot_dimension_numbers<[1], [0], [0], [1], [0, 0, 1, 1], [], []>} : vector<1x16xf32>, vector<16x2xf32>, vector<1x2xf32> -> vector<1x2xf32>
      %cst_31 = arith.constant 1.250000e-01 : f32
      %64 = vector.broadcast %cst_31 : f32 to vector<1x2xf32>
      %65 = arith.mulf %63, %64 : vector<1x2xf32>
      %c0_32 = arith.constant 0 : index
      %c0_33 = arith.constant 0 : index
      %c0_34 = arith.constant 0 : index
      %66 = vector.load %arg7[%c0_32, %c0_33, %c0_34] : memref<1x1x2xf32, #tpu.memory_space<vmem>>, vector<1x1x2xf32>
      %67 = vector.shape_cast %66 : vector<1x1x2xf32> to vector<1x2xf32>
      %68 = vector.shape_cast %65 : vector<1x2xf32> to vector<1x1x2xf32>
      tpu.vector_store %arg7[%c0_32, %c0_33, %c0_34], %68 {strides = array<i32>} : memref<1x1x2xf32, #tpu.memory_space<vmem>>, vector<1x1x2xf32>,
    } else {
    }
    return
  }
  func.func @transform_0(%arg0: i32, %arg1: i32) -> (i32, i32, i32) {
    %c1_i32 = arith.constant 1 : i32
    %0 = arith.muli %arg0, %c1_i32 : i32
    %1 = arith.addi %0, %arg1 : i32
    %c0_i32 = arith.constant 0 : i32
    %c0_i32_0 = arith.constant 0 : i32
    %c0_i32_1 = arith.constant 0 : i32
    return %1, %c0_i32, %c0_i32_0 : i32, i32, i32
  }
  func.func @transform_1(%arg0: i32, %arg1: i32) -> (i32, i32, i32) {
    %c1_i32 = arith.constant 1 : i32
    %0 = arith.muli %arg0, %c1_i32 : i32
    %1 = arith.addi %0, %arg1 : i32
    %c0_i32 = arith.constant 0 : i32
    %c0_i32_0 = arith.constant 0 : i32
    %c0_i32_1 = arith.constant 0 : i32
    return %1, %c0_i32, %c0_i32_0 : i32, i32, i32
  }
  func.func @transform_2(%arg0: i32, %arg1: i32) -> (i32, i32, i32) {
    %c1_i32 = arith.constant 1 : i32
    %0 = arith.muli %arg0, %c1_i32 : i32
    %1 = arith.addi %0, %arg1 : i32
    %c0_i32 = arith.constant 0 : i32
    %c0_i32_0 = arith.constant 0 : i32
    %c0_i32_1 = arith.constant 0 : i32
    return %1, %c0_i32, %c0_i32_0 : i32, i32, i32
  }
  func.func @transform_3(%arg0: i32, %arg1: i32) -> (i32, i32, i32) {
    %c1_i32 = arith.constant 1 : i32
    %0 = arith.muli %arg0, %c1_i32 : i32
    %1 = arith.addi %0, %arg1 : i32
    %c0_i32 = arith.constant 0 : i32
    %c0_i32_0 = arith.constant 0 : i32
    %c0_i32_1 = arith.constant 0 : i32
    return %1, %c0_i32, %c0_i32_0 : i32, i32, i32
  }
  func.func @transform_4(%arg0: i32, %arg1: i32) -> (i32, i32, i32) {
    %c1_i32 = arith.constant 1 : i32
    %0 = arith.muli %arg0, %c1_i32 : i32
    %1 = arith.addi %0, %arg1 : i32
    %c0_i32 = arith.constant 0 : i32
    %c0_i32_0 = arith.constant 0 : i32
    %c0_i32_1 = arith.constant 0 : i32
    return %1, %c0_i32, %c0_i32_0 : i32, i32, i32
  }
  func.func @transform_5(%arg0: i32, %arg1: i32) -> (i32, i32, i32) {
    %c0_i32 = arith.constant 0 : i32
    %c0_i32_0 = arith.constant 0 : i32
    %c0_i32_1 = arith.constant 0 : i32
    return %arg0, %c0_i32, %c0_i32_0 : i32, i32, i32
  }
}

</mosaic_0001>

<llo_original>
// kernel: tpu_custom_call.1
$region0: #{tpu_custom_call.1}
  #allocation0 [shape = 'u32[]', space=smem, size = 0x4, offset = 0x4, fixed_abs, tag = 'smem constant byte address 0x4 - core index']
  #allocation1 [shape = 'u32[72,128]{1,0:T(1,128)}', space=vmem, size = 0x9000, scoped, tag = 'internal scratch']
  #allocation2 [shape = 'f32[1,16]{1,0:T(1,128)}', space=vmem, size = 0x200, scoped, tag = 'scratch operand']
  %s0 = inlined_call_operand.hbm [shape: f32[1,16,128], index: 0, kind: input, shape index: {}]
  %s1 = inlined_call_operand.hbm [shape: f32[1,16,128], index: 1, kind: input, shape index: {}]
  %s2 = inlined_call_operand.hbm [shape: f32[1,16,128], index: 2, kind: input, shape index: {}]
  %s3 = inlined_call_operand.vmem [shape: f32[1,1,16], index: 3, kind: input, shape index: {}]
  %s4 = inlined_call_operand.vmem [shape: f32[1,1,16], index: 4, kind: input, shape index: {}]
  %s5 = inlined_call_operand.hbm [shape: f32[1,1,2], index: 5, kind: output, shape index: {}]
  %s6 = sld [smem:[#allocation0]]
  $region50: #{tpu_custom_call.1} parent=0
    _
  %s8 = ssub.s32 1, %s6
  %s9 = scalar_select 0, %s8, %s6
  $region1: #{tpu_custom_call.1} parent=0
    #allocation3 [shape = 'u8[8192]{0}', space=vmem, size = 0x2000, scoped, tag = 'input window, operand 0, single buffered']
    #allocation4 [shape = 's32[1]{0}', space=sflag, size = 0x4, scoped, tag = 'scoped memory for tpu_custom_call.1']
    #allocation5 [shape = 's32[1]{0}', space=sflag, size = 0x4, scoped, tag = 'scoped memory for tpu_custom_call.1']
    #allocation6 [shape = 'u8[8192]{0}', space=vmem, size = 0x2000, scoped, tag = 'input window, operand 1, single buffered']
    #allocation7 [shape = 's32[1]{0}', space=sflag, size = 0x4, scoped, tag = 'scoped memory for tpu_custom_call.1']
    #allocation8 [shape = 'u8[8192]{0}', space=vmem, size = 0x2000, scoped, tag = 'input window, operand 2, single buffered']
    #allocation9 [shape = 'u8[512]{0}', space=vmem, size = 0x400, scoped, tag = 'output window, operand 0, single buffered']
    %10 = vsyncpa [#allocation4], 0
    %11 = vsyncpa [#allocation7], 0
    %12 = vsyncpa [#allocation5], 0
    // Predicated region
    $region2: #{tpu_custom_call.1} parent=1 // pred_check
      _
    $region3: #{tpu_custom_call.1} parent=1 // pred_check_branch
      %14 = sbr.rel (0) target = $region5
    $region4: #{tpu_custom_call.1} parent=1 // pred_region
      %s15 = sadd.s32 0, 0
      %17 = vsyncadd [#allocation4], 0
      %s18 = smul.addr %s15, 2
      %s19 = smul.addr %s18, 8
      %s20 = scalar_lea.hbm %s0, %s19
      %s21 = sshll.u32 %s20, 4
      %s22 = int_to_ptr.hbm [resolvable:$true] %s21
      %s23 = sshll.u32 [#allocation3], 4
      %s24 = int_to_ptr.vmem [resolvable:$true] %s23
      %29 = dma.hbm_to_vmem [thread:$0]  %s22, 256, %s24, [#allocation4], 128, 128, 8
    $region5: #{tpu_custom_call.1} parent=1 // pred_fallthru
      _
    // Predicated region
    $region6: #{tpu_custom_call.1} parent=1 // pred_check
      _
    $region7: #{tpu_custom_call.1} parent=1 // pred_check_branch
      %31 = sbr.rel (0) target = $region9
    $region8: #{tpu_custom_call.1} parent=1 // pred_region
      %s32 = sadd.s32 0, 0
      %34 = vsyncadd [#allocation7], 0
      %s35 = smul.addr %s32, 2
      %s36 = smul.addr %s35, 8
      %s37 = scalar_lea.hbm %s1, %s36
      %s38 = sshll.u32 %s37, 4
      %s39 = int_to_ptr.hbm [resolvable:$true] %s38
      %s40 = sshll.u32 [#allocation6], 4
      %s41 = int_to_ptr.vmem [resolvable:$true] %s40
      %46 = dma.hbm_to_vmem [thread:$0]  %s39, 256, %s41, [#allocation7], 128, 128, 8
    $region9: #{tpu_custom_call.1} parent=1 // pred_fallthru
      _
    // Predicated region
    $region10: #{tpu_custom_call.1} parent=1 // pred_check
      _
    $region11: #{tpu_custom_call.1} parent=1 // pred_check_branch
      %48 = sbr.rel (0) target = $region13
    $region12: #{tpu_custom_call.1} parent=1 // pred_region
      %s49 = sadd.s32 0, 0
      %51 = vsyncadd [#allocation7], 0
      %s52 = smul.addr %s49, 2
      %s53 = smul.addr %s52, 8
      %s54 = scalar_lea.hbm %s2, %s53
      %s55 = sshll.u32 %s54, 4
      %s56 = int_to_ptr.hbm [resolvable:$true] %s55
      %s57 = sshll.u32 [#allocation8], 4
      %s58 = int_to_ptr.vmem [resolvable:$true] %s57
      %63 = dma.hbm_to_vmem [thread:$0]  %s56, 256, %s58, [#allocation7], 128, 128, 8
    $region13: #{tpu_custom_call.1} parent=1 // pred_fallthru
      _
    // Predicated region
    $region14: #{tpu_custom_call.1} parent=1 // pred_check
      _
    $region15: #{tpu_custom_call.1} parent=1 // pred_check_branch
      %65 = sbr.rel (0) target = $region17
    $region16: #{tpu_custom_call.1} parent=1 // pred_region
      %s66 = sadd.s32 0, 0
      %p67 = scmp.lt.s32.totalorder %s66, 0
      %s68 = scalar_select %p67, %s66, 0
      %s69 = scalar_lea.vmem %s3, %s68
      %s70 = sadd.s32 0, 0
    $region17: #{tpu_custom_call.1} parent=1 // pred_fallthru
      _
    // Predicated region
    $region18: #{tpu_custom_call.1} parent=1 // pred_check
      _
    $region19: #{tpu_custom_call.1} parent=1 // pred_check_branch
      %72 = sbr.rel (0) target = $region21
    $region20: #{tpu_custom_call.1} parent=1 // pred_region
      %s73 = sadd.s32 0, 0
      %p74 = scmp.lt.s32.totalorder %s73, 0
      %s75 = scalar_select %p74, %s73, 0
      %s76 = scalar_lea.vmem %s4, %s75
      %s77 = sadd.s32 0, 0
    $region21: #{tpu_custom_call.1} parent=1 // pred_fallthru
      _
    // Predicated region
    $region22: #{tpu_custom_call.1} parent=1 // pred_check
      _
    $region23: #{tpu_custom_call.1} parent=1 // pred_check_branch
      %79 = sbr.rel (0) target = $region25
    $region24: #{tpu_custom_call.1} parent=1 // pred_region
      %81 = dma.done [#allocation4], 256
    $region25: #{tpu_custom_call.1} parent=1 // pred_fallthru
      _
    // Predicated region
    $region26: #{tpu_custom_call.1} parent=1 // pred_check
      _
    $region27: #{tpu_custom_call.1} parent=1 // pred_check_branch
      %83 = sbr.rel (0) target = $region29
    $region28: #{tpu_custom_call.1} parent=1 // pred_region
      %85 = dma.done [#allocation7], 256
    $region29: #{tpu_custom_call.1} parent=1 // pred_fallthru
      _
    // Predicated region
    $region30: #{tpu_custom_call.1} parent=1 // pred_check
      _
    $region31: #{tpu_custom_call.1} parent=1 // pred_check_branch
      %87 = sbr.rel (0) target = $region33
    $region32: #{tpu_custom_call.1} parent=1 // pred_region
      %89 = dma.done [#allocation7], 256
    $region33: #{tpu_custom_call.1} parent=1 // pred_fallthru
      _
    %s90 = sadd.s32 0, 0
    %p91 = scmp.lt.s32.totalorder %s90, 0
    %s92 = scalar_select %p91, %s90, 0
    %s93 = scalar_lea.vmem %s3, %s92
    %s94 = sadd.s32 0, 0
    %p95 = scmp.lt.s32.totalorder %s94, 0
    %s96 = scalar_select %p95, %s94, 0
    %s97 = scalar_lea.vmem %s4, %s96
    %s98 = sadd.s32 0, 0
    %s99 = sadd.s32 0, 0
    %s100 = sadd.s32 0, 0
    %s101 = sadd.s32 0, 0
    %p102 = scmp.lt.s32.totalorder %s101, 0
    %s103 = scalar_select %p102, %s101, 0
    %s104 = scalar_lea.vmem %s3, %s103
    %s105 = sadd.s32 0, 0
    %s106 = sadd.s32 0, 0
    %p107 = scmp.lt.s32.totalorder %s106, 0
    %s108 = scalar_select %p107, %s106, 0
    %s109 = scalar_lea.vmem %s4, %s108
    %s110 = sadd.s32 0, 0
    %p111 = scmp.eq.s32.totalorder 0, 0
    // Predicated region
    $region34: #{tpu_custom_call.1} parent=1 // pred_check
      %p112 = pneg %p111
    $region35: #{tpu_custom_call.1} parent=1 // pred_check_branch
      %114 = sbr.rel (%p112) target = $region37
    $region36: #{tpu_custom_call.1} parent=1 // pred_region
      %vm115 = vcmask 122880
      %116 = vst.msk [vmem:[#allocation2] sm:$0x1] %vm115, 0.0
    $region37: #{tpu_custom_call.1} parent=1 // pred_fallthru
      _
    %v117 = vld [vmem:[#allocation3] sm:$0xff]
    %v118 = vld [vmem:[#allocation3 + $0x8] sm:$0xff]
    %v119 = vld [vmem:[#allocation6] sm:$0xff]
    %v120 = vld [vmem:[#allocation6 + $0x8] sm:$0xff]
    %v121 = vld [vmem:[#allocation8] sm:$0xff]
    %v122 = vld [vmem:[#allocation8 + $0x8] sm:$0xff]
    %v123 = vsub.f32 %v117, %v119
    %v124 = vsub.f32 %v118, %v120
    %v125 = vsub.f32 %v117, %v121
    %v126 = vsub.f32 %v118, %v122
    %v127 = vmul.f32 %v123, %v123
    %v128 = vmul.f32 %v124, %v124
    %v129 = vmul.f32 %v125, %v125
    %v130 = vmul.f32 %v126, %v126
    %131 = vmatpush.xpose.msra.mxu0 0.0
    %132 = vmatpush.xpose.msra.mxu0 0.0
    %133 = vmatpush.xpose.msra.mxu0 0.0
    %134 = vmatpush.xpose.msra.mxu0 0.0
    %135 = vmatpush.xpose.msra.mxu0 0.0
    %136 = vmatpush.xpose.msra.mxu0 0.0
    %137 = vmatpush.xpose.msra.mxu0 0.0
    %138 = vmatpush.xpose.msra.mxu0 0.0
    %139 = vmatpush.xpose.msra.mxu0 0.0
    %140 = vmatpush.xpose.msra.mxu0 0.0
    %141 = vmatpush.xpose.msra.mxu0 0.0
    %142 = vmatpush.xpose.msra.mxu0 0.0
    %143 = vmatpush.xpose.msra.mxu0 0.0
    %144 = vmatpush.xpose.msra.mxu0 0.0
    %145 = vmatpush.xpose.msra.mxu0 %v128
    %146 = vmatpush.xpose.msra.mxu0 %v127
    %147 = vmatmul.f32.gmra.mxu0 1.0
    %v148 = vpop.f32.mrf.mxu0
    %v149 = vadd.f32 0.0, %v148
    %150 = vdwg.mxu0
    %151 = vmatpush.xpose.msra.mxu0 0.0
    %152 = vmatpush.xpose.msra.mxu0 0.0
    %153 = vmatpush.xpose.msra.mxu0 0.0
    %154 = vmatpush.xpose.msra.mxu0 0.0
    %155 = vmatpush.xpose.msra.mxu0 0.0
    %156 = vmatpush.xpose.msra.mxu0 0.0
    %157 = vmatpush.xpose.msra.mxu0 0.0
    %158 = vmatpush.xpose.msra.mxu0 0.0
    %159 = vmatpush.xpose.msra.mxu0 0.0
    %160 = vmatpush.xpose.msra.mxu0 0.0
    %161 = vmatpush.xpose.msra.mxu0 0.0
    %162 = vmatpush.xpose.msra.mxu0 0.0
    %163 = vmatpush.xpose.msra.mxu0 0.0
    %164 = vmatpush.xpose.msra.mxu0 0.0
    %165 = vmatpush.xpose.msra.mxu0 %v130
    %166 = vmatpush.xpose.msra.mxu0 %v129
    %167 = vmatmul.f32.gmra.mxu0 1.0
    %v168 = vpop.f32.mrf.mxu0
    %v169 = vadd.f32 0.0, %v168
    %170 = vdwg.mxu0
    %v171 = vrsqrt.pop %v149
    %v172 = vmul.f32 %v171, %v149
    %v173 = vmul.f32 %v172, %v171
    %v174 = vmul.f32 0.5, %v173
    %v175 = vsub.f32 1.5, %v174
    %v176 = vmul.f32 %v171, %v175
    %v177 = vmul.f32 %v149, %v176
    %vm178 = vcmp.eq.f32.partialorder %v149, inf
    %v179 = vsel %vm178, %v149, %v177
    %vm180 = vcmp.eq.f32.partialorder %v149, 0.0
    %v181 = vand.u32 %v149, 2147483648
    %v182 = vsel %vm180, %v181, %v179
    %v183 = vsub.f32 0.0, %v182
    %v184 = vmul.f32 %v183, 1.442695
    %v185 = vpow.pop %v184
    %v186 = vrsqrt.pop %v169
    %v187 = vmul.f32 %v186, %v169
    %v188 = vmul.f32 %v187, %v186
    %v189 = vmul.f32 0.5, %v188
    %v190 = vsub.f32 1.5, %v189
    %v191 = vmul.f32 %v186, %v190
    %v192 = vmul.f32 %v169, %v191
    %vm193 = vcmp.eq.f32.partialorder %v169, inf
    %v194 = vsel %vm193, %v169, %v192
    %vm195 = vcmp.eq.f32.partialorder %v169, 0.0
    %v196 = vand.u32 %v169, 2147483648
    %v197 = vsel %vm195, %v196, %v194
    %v198 = vsub.f32 0.0, %v197
    %v199 = vmul.f32 %v198, 1.442695
    %v200 = vpow.pop %v199
    %v201 = vld [vmem:[%s104] sm:$0x1]
    %v202 = vld [vmem:[%s109] sm:$0x1]
    %v203 = vsub.f32 %v201, %v185
    %v204 = vsub.f32 %v202, %v200
    %v205 = vsub.f32 %v200, %v185
    %v206 = vmax.f32 %v205, 0.0
    %v207 = vmul.f32 %v203, %v203
    %v208 = vmul.f32 %v204, %v204
    %v209 = vadd.f32 %v207, %v208
    %vm210 = vcmp.gt.f32.partialorder %v201, %v202
    %v211 = vmul.f32 %v206, %v206
    %v212 = vsel %vm210, %v211, 0.0
    %v213 = vadd.f32 %v209, %v212
    %v214 = vld [vmem:[#allocation2] sm:$0x1]
    %v215 = vadd.f32 %v214, %v213
    %vm216 = vcmask 122880
    %217 = vst.msk [vmem:[#allocation2] sm:$0x1] %vm216, %v215
    // Predicated region
    $region38: #{tpu_custom_call.1} parent=1 // pred_check
      %p218 = pneg %p111
    $region39: #{tpu_custom_call.1} parent=1 // pred_check_branch
      %220 = sbr.rel (%p218) target = $region41
    $region40: #{tpu_custom_call.1} parent=1 // pred_region
      %v221 = vlaneseq
      %v222 = vshrl.u32 %v221, 7
      %v223 = vadd.s32 %v222, 8
      %v224 = vlaneseq
      %v225 = vand.u32 %v224, 127
      %v226 = vmul.u32 %v225, 8
      %vm227 = vcmp.ge.s32.totalorder %v222, %v226
      %vm228 = vcmp.ge.s32.totalorder %v223, %v226
      %v229 = vadd.s32 %v225, 1
      %v230 = vmul.u32 %v229, 8
      %vm231 = vcmp.lt.s32.totalorder %v222, %v230
      %vm232 = vcmp.lt.s32.totalorder %v223, %v230
      %vm233 = vmand %vm227, %vm231
      %vm234 = vmand %vm228, %vm232
      %v235 = vsel %vm233, 1, 0
      %v236 = vsel %vm234, 1, 0
      %v237 = vcvt.s32.f32 %v235
      %v238 = vcvt.s32.f32 %v236
      %v239 = vld [vmem:[#allocation2] sm:$0x1]
      %vm240 = vcmask 130048
      %v242 = vsel %vm240, %v239, 0
      %244 = vmatpush.msra.mxu0 0.0
      %245 = vmatpush.msra.mxu0 0.0
      %246 = vmatpush.msra.mxu0 0.0
      %247 = vmatpush.msra.mxu0 0.0
      %248 = vmatpush.msra.mxu0 0.0
      %249 = vmatpush.msra.mxu0 0.0
      %250 = vmatpush.msra.mxu0 0.0
      %251 = vmatpush.msra.mxu0 0.0
      %252 = vmatpush.msra.mxu0 0.0
      %253 = vmatpush.msra.mxu0 0.0
      %254 = vmatpush.msra.mxu0 0.0
      %255 = vmatpush.msra.mxu0 0.0
      %256 = vmatpush.msra.mxu0 0.0
      %257 = vmatpush.msra.mxu0 0.0
      %258 = vmatpush.msra.mxu0 %v238
      %259 = vmatpush.msra.mxu0 %v237
      %260 = vmatmul.f32.gmra.mxu0 %v242
      %v261 = vpop.f32.mrf.mxu0
      %v262 = vadd.f32 0.0, %v261
      %263 = vdwg.mxu0
      %v264 = vmul.f32 %v262, 0.125
      %vm265 = vcmask 8192
      %266 = vst.msk [vmem:[#allocation9] sm:$0x1] %vm265, %v264
    $region41: #{tpu_custom_call.1} parent=1 // pred_fallthru
      _
    // Predicated region
    $region42: #{tpu_custom_call.1} parent=1 // pred_check
      _
    $region43: #{tpu_custom_call.1} parent=1 // pred_check_branch
      %268 = sbr.rel (0) target = $region45
    $region44: #{tpu_custom_call.1} parent=1 // pred_region
      %270 = vsyncadd [#allocation5], 0
      %s272 = sshll.u32 [#allocation9], 4
      %s273 = int_to_ptr.vmem [resolvable:$true] %s272
      %s274 = sshll.u32 %s5, 4
      %s275 = int_to_ptr.hbm [resolvable:$true] %s274
      %277 = dma.vmem_to_hbm [thread:$0]  %s273, 16, %s275, [#allocation5]
    $region45: #{tpu_custom_call.1} parent=1 // pred_fallthru
      _
    // Predicated region
    $region46: #{tpu_custom_call.1} parent=1 // pred_check
      _
    $region47: #{tpu_custom_call.1} parent=1 // pred_check_branch
      %279 = sbr.rel (0) target = $region49
    $region48: #{tpu_custom_call.1} parent=1 // pred_region
      %281 = dma.done [#allocation5], 16
    $region49: #{tpu_custom_call.1} parent=1 // pred_fallthru
      _
    %282 = vsyncpa [#allocation4], 1
    %283 = vsyncpa [#allocation7], 1
    %284 = vsyncpa [#allocation5], 1

</llo_original>
